<compile_context>
chip_gen: v7x
topology: tpu7x:2x2x1
jax: 0.10.0
libtpu: 0.0.40
codegen_flags: <defaults>
</compile_context>

<pallas_src>
import functools

import jax
import jax.numpy as jnp
from jax.experimental import pallas as pl
from jax.experimental.pallas import tpu as pltpu


def _round_up(n, m):
    return (n + m - 1) // m * m


def _vmem_limit_bytes():
    """~3/4 of physical VMEM, capped at 96 MiB.

    v5e/v6e (128 MiB physical) -> 96 MiB; v7x (64 MiB) -> 48 MiB.
    Falls back to a conservative 32 MiB if the hardware query is unavailable.
    """
    try:
        cap = int(pltpu.get_tpu_info().vmem_capacity_bytes)
        return min(cap * 3 // 4, 96 * 1024 * 1024)
    except Exception:
        return 32 * 1024 * 1024


def _pick_batch_tile(batch, jp, per_item_bytes, weight_bytes, budget,
                     target_rows=256):
    """Pick TB (a divisor of batch) so that TB*Jp reaches the MXU row target
    while the per-step VMEM footprint stays inside the budget.  Prefer keeping
    >= 2 grid steps (v7x megacore) when that does not sacrifice the row target.
    """
    divisors = [d for d in range(1, batch + 1) if batch % d == 0]
    fits = [d for d in divisors if weight_bytes + d * per_item_bytes <= budget]
    if not fits:
        fits = [1]
    reach = [d for d in fits if d * jp >= target_rows]
    tb = reach[0] if reach else fits[-1]
    if batch // tb < 2:
        cands = [d for d in fits if batch // d >= 2 and d * jp >= target_rows]
        if cands:
            tb = cands[-1]
    return tb


# -----------------------------------------------------------------------------
# Fused kernel: HRNet stand-in (stride-4 1x1 conv) + SimCC head, TB images/step.
# -----------------------------------------------------------------------------
def _simcc_fused_kernel(
    x_ref,       # (TB, C, Fs)   f32  stride-4 subsampled input, TB batch items
    cwT_ref,     # (Jp, C)       f32  1x1-conv weight, transposed (zero rows >=J)
    cb_ref,      # (Jp, 1)       f32  1x1-conv bias (zero rows >= J)
    w2_ref,      # (Fs, NX+NY)   bf16 packed [x_vector2 | y_vector2] weights
    b2_ref,      # (1, NX+NY)    f32  packed first-layer biases
    wx3_ref,     # (NX, WP)      bf16 x_vector3 weight (zero padded)
    bx3_ref,     # (1, WP)       f32
    wy3_ref,     # (NY, HP)      bf16 y_vector3 weight (zero padded)
    by3_ref,     # (1, HP)       f32
    f0_ref,      # (TB*Jp, Fs)   f32  backbone output (NCHW, spatially flattened)
    px_ref,      # (TB*Jp, WP)   f32  pred_x (lane padded)
    py_ref,      # (TB*Jp, HP)   f32  pred_y (lane padded)
    *,
    tb,          # static: batch tile
    jp,          # static: padded joint count (multiple of 8)
    nx,          # static: padded x-branch hidden width (columns of wx3 input)
):
    x = x_ref[...]               # (TB, C, Fs)
    w_t = cwT_ref[...]           # (Jp, C)
    n_ch = x.shape[1]
    fs = x.shape[2]

    # HRNet stand-in: 1x1 conv over channels.  K = C is tiny, so do it as a
    # VPU broadcast FMA across the whole batch tile (the MXU would be ~1%
    # occupied on this contraction, and it keeps f0 exact f32).
    # TODO(synk): if the stand-in grows past C ~ 8 channels, switch this static
    # unroll to an MXU contraction (the MXU slot is idle during this phase).
    acc = jnp.zeros((tb, jp, fs), jnp.float32)
    for c in range(n_ch):        # static unroll; C known at trace time
        acc = acc + x[:, c:c + 1, :] * w_t[:, c:c + 1][None, :, :]
    f0 = acc + cb_ref[...][None, :, :]

    # Free flatten: Jp is a multiple of 8, so (TB, Jp, Fs) -> (TB*Jp, Fs) never
    # crosses an (8, 128) tile; the store below is sublane/lane dense.
    f0_2d = f0.reshape(tb * jp, fs)
    f0_ref[...] = f0_2d

    # Fused SimCC head with M = TB*Jp rows.  One packed first-layer matmul
    # feeds both branches; bf16 MXU inputs, f32 accumulation, f32 bias adds.
    f_bf = f0_2d.astype(jnp.bfloat16)
    hid = jnp.dot(f_bf, w2_ref[...], preferred_element_type=jnp.float32)
    hid = hid + b2_ref[...]
    hid_bf = hid.astype(jnp.bfloat16)
    # nx is a multiple of 128, so this lane split is tile aligned.
    px_ref[...] = (
        jnp.dot(hid_bf[:, :nx], wx3_ref[...], preferred_element_type=jnp.float32)
        + bx3_ref[...]
    )
    py_ref[...] = (
        jnp.dot(hid_bf[:, nx:], wy3_ref[...], preferred_element_type=jnp.float32)
        + by3_ref[...]
    )


# -----------------------------------------------------------------------------
# Wrapper
# -----------------------------------------------------------------------------
@functools.partial(
    jax.jit, static_argnames=("n_joints", "w", "h", "single_buffer_weights"))
def _forward_impl(x, packed, *, n_joints, w, h, single_buffer_weights):
    B, C, H, W = x.shape
    H4, W4 = H // 4, W // 4
    Fs = H4 * W4
    assert Fs == (w // 4) * (h // 4), "backbone spatial size must match SimCC head"

    # Stride-4 spatial subsample (glue for the backbone stand-in).
    x_sub = x[:, :, ::4, ::4].reshape(B, C, Fs)

    Jp = packed["conv_wT"].shape[0]        # n_joints rounded up to 8
    assert Jp % 8 == 0 and Jp >= n_joints
    NX, WP = packed["wx3"].shape           # pad128(2w), pad128(w)
    NY, HP = packed["wy3"].shape           # pad128(2h), pad128(h)
    NXY = NX + NY

    weight_names = ("conv_wT", "conv_b", "w2", "b2", "wx3", "bx3", "wy3", "by3")
    weight_bytes = sum(packed[k].size * packed[k].dtype.itemsize
                       for k in weight_names)

    # Per-image VMEM: double-buffered activation/output blocks + temporaries.
    per_item_bytes = (
        2 * (C * Fs + Jp * Fs + Jp * WP + Jp * HP) * 4
        + Jp * (6 * Fs + 6 * NXY + 4 * WP + 4 * HP)
    )
    vmem_limit = _vmem_limit_bytes()
    TB = _pick_batch_tile(B, Jp, per_item_bytes, weight_bytes,
                          budget=int(vmem_limit * 0.8), target_rows=256)
    grid = (B // TB,)

    const_idx = lambda b: (0, 0)           # weights: VMEM-resident across grid
    if single_buffer_weights:
        # Constant block index -> one buffer is enough; frees ~half weight VMEM.
        wspec = lambda shape: pl.BlockSpec(shape, const_idx,
                                           pipeline_mode=pl.Buffered(1))
    else:
        wspec = lambda shape: pl.BlockSpec(shape, const_idx)

    kernel = functools.partial(_simcc_fused_kernel, tb=TB, jp=Jp, nx=NX)

    flops = 2 * B * Jp * (C * Fs + Fs * NXY + NX * WP + NY * HP)
    bytes_accessed = (x_sub.size * 4 + weight_bytes
                      + B * Jp * (Fs + WP + HP) * 4)

    f0_2d, px_pad, py_pad = pl.pallas_call(
        kernel,
        grid=grid,
        in_specs=[
            pl.BlockSpec((TB, C, Fs), lambda b: (b, 0, 0)),   # activations
            wspec((Jp, C)),
            wspec((Jp, 1)),
            wspec((Fs, NXY)),
            wspec((1, NXY)),
            wspec((NX, WP)),
            wspec((1, WP)),
            wspec((NY, HP)),
            wspec((1, HP)),
        ],
        out_specs=(
            pl.BlockSpec((TB * Jp, Fs), lambda b: (b, 0)),
            pl.BlockSpec((TB * Jp, WP), lambda b: (b, 0)),
            pl.BlockSpec((TB * Jp, HP), lambda b: (b, 0)),
        ),
        out_shape=(
            jax.ShapeDtypeStruct((B * Jp, Fs), jnp.float32),
            jax.ShapeDtypeStruct((B * Jp, WP), jnp.float32),
            jax.ShapeDtypeStruct((B * Jp, HP), jnp.float32),
        ),
        compiler_params=pltpu.CompilerParams(
            dimension_semantics=("parallel",),    # v7x: batch tiles over 2 TCs
            vmem_limit_bytes=vmem_limit,
        ),
        cost_estimate=pl.CostEstimate(
            flops=flops, transcendentals=0, bytes_accessed=bytes_accessed),
    )(
        x_sub,
        packed["conv_wT"], packed["conv_b"],
        packed["w2"], packed["b2"],
        packed["wx3"], packed["bx3"],
        packed["wy3"], packed["by3"],
    )

    # Strip joint / lane padding; f0 back to NCHW like the PyTorch module.
    f0 = f0_2d.reshape(B, Jp, H4, W4)[:, :n_joints]
    pred_x = px_pad.reshape(B, Jp, WP)[:, :n_joints, :w]
    pred_y = py_pad.reshape(B, Jp, HP)[:, :n_joints, :h]
    return pred_x, pred_y, f0


def simcc_hrv3_forward(x, packed, *, n_joints, w, h):
    # Primary path uses pl.Buffered(1) on the constant-index weight specs; fall
    # back to default double buffering on jax versions that lack pipeline_mode.
    try:
        return _forward_impl(x, packed, n_joints=n_joints, w=w, h=h,
                             single_buffer_weights=True)
    except Exception:
        return _forward_impl(x, packed, n_joints=n_joints, w=w, h=h,
                             single_buffer_weights=False)


# -----------------------------------------------------------------------------
# Parameters: raw (PyTorch-like, f32) and packed (padded / bf16) for the kernel.
# -----------------------------------------------------------------------------
def init_params(key, *, in_ch, n_joints, w, h):
    F = (w // 4) * (h // 4)
    ks = jax.random.split(key, 10)
    s = 0.02
    # Weights stored as (in, out): y = x @ W + b  (== PyTorch x @ weight.T + bias).
    return {
        "conv_w": s * jax.random.normal(ks[0], (in_ch, n_joints), jnp.float32),
        "conv_b": s * jax.random.normal(ks[1], (1, n_joints), jnp.float32),
        "wx2": s * jax.random.normal(ks[2], (F, 2 * w), jnp.float32),
        "bx2": s * jax.random.normal(ks[3], (1, 2 * w), jnp.float32),
        "wy2": s * jax.random.normal(ks[4], (F, 2 * h), jnp.float32),
        "by2": s * jax.random.normal(ks[5], (1, 2 * h), jnp.float32),
        "wx3": s * jax.random.normal(ks[6], (2 * w, w), jnp.float32),
        "bx3": s * jax.random.normal(ks[7], (1, w), jnp.float32),
        "wy3": s * jax.random.normal(ks[8], (2 * h, h), jnp.float32),
        "by3": s * jax.random.normal(ks[9], (1, h), jnp.float32),
    }


def pack_params(p, *, n_joints, w, h):
    """Pad joints to a multiple of 8 and lane dims to multiples of 128, fuse the
    x/y first layers into one fat weight, cast matmul weights to bf16."""
    Jp = _round_up(n_joints, 8)
    NX = _round_up(2 * w, 128)
    NY = _round_up(2 * h, 128)
    WP = _round_up(w, 128)
    HP = _round_up(h, 128)

    def pad_cols(a, n):
        return jnp.pad(a, ((0, 0), (0, n - a.shape[1])))

    def pad_rows(a, n):
        return jnp.pad(a, ((0, n - a.shape[0]), (0, 0)))

    w2 = jnp.concatenate([pad_cols(p["wx2"], NX), pad_cols(p["wy2"], NY)], axis=1)
    b2 = jnp.concatenate([pad_cols(p["bx2"], NX), pad_cols(p["by2"], NY)], axis=1)
    wx3 = pad_cols(pad_rows(p["wx3"], NX), WP)
    wy3 = pad_cols(pad_rows(p["wy3"], NY), HP)
    return {
        "conv_wT": pad_rows(p["conv_w"].T, Jp),          # (Jp, C)  f32
        "conv_b": pad_rows(p["conv_b"].T, Jp),           # (Jp, 1)  f32
        "w2": w2.astype(jnp.bfloat16),                   # (F, NX+NY)
        "b2": b2.astype(jnp.float32),                    # (1, NX+NY)
        "wx3": wx3.astype(jnp.bfloat16),                 # (NX, WP)
        "bx3": pad_cols(p["bx3"], WP).astype(jnp.float32),
        "wy3": wy3.astype(jnp.bfloat16),                 # (NY, HP)
        "by3": pad_cols(p["by3"], HP).astype(jnp.float32),
    }


if __name__ == "__main__":
    # Small shapes consistent with the module: w = h = 16 so the SimCC head
    # expects f0 of spatial size (h//4, w//4) = (4, 4); nJoints = 4.
    B, C, H, W = 2, 4, 16, 16
    W_SIMCC, H_SIMCC, N_JOINTS = 16, 16, 4

    key = jax.random.PRNGKey(0)
    k_x, k_p = jax.random.split(key)
    x = jax.random.normal(k_x, (B, C, H, W), jnp.float32)   # NCHW, like PyTorch
    params = init_params(k_p, in_ch=C, n_joints=N_JOINTS, w=W_SIMCC, h=H_SIMCC)
    packed = pack_params(params, n_joints=N_JOINTS, w=W_SIMCC, h=H_SIMCC)

    pred_x, pred_y, f0 = simcc_hrv3_forward(
        x, packed, n_joints=N_JOINTS, w=W_SIMCC, h=H_SIMCC
    )
    jax.block_until_ready((pred_x, pred_y, f0))

    assert pred_x.shape == (B, N_JOINTS, W_SIMCC), pred_x.shape
    assert pred_y.shape == (B, N_JOINTS, H_SIMCC), pred_y.shape
    assert f0.shape == (B, N_JOINTS, H // 4, W // 4), f0.shape

    # ---- reference checks -------------------------------------------------
    # Backbone stand-in (exact f32 elementwise reference).
    x_sub = x[:, :, ::4, ::4]                                       # (B, C, H4, W4)
    f0_ref = (
        jnp.sum(x_sub[:, :, None, :, :] * params["conv_w"][None, :, :, None, None],
                axis=1)
        + params["conv_b"][0][None, :, None, None]
    )
    assert jnp.allclose(f0, f0_ref, atol=1e-5), "f0 mismatch"

    # SimCC head reference, mirroring the kernel's bf16-input / f32-accumulate
    # numerical contract.
    f_bf = f0.reshape(B, N_JOINTS, -1).astype(jnp.bfloat16)
    fx = jnp.dot(f_bf, params["wx2"].astype(jnp.bfloat16),
                 preferred_element_type=jnp.float32) + params["bx2"][0]
    fy = jnp.dot(f_bf, params["wy2"].astype(jnp.bfloat16),
                 preferred_element_type=jnp.float32) + params["by2"][0]
    px_ref = jnp.dot(fx.astype(jnp.bfloat16), params["wx3"].astype(jnp.bfloat16),
                     preferred_element_type=jnp.float32) + params["bx3"][0]
    py_ref = jnp.dot(fy.astype(jnp.bfloat16), params["wy3"].astype(jnp.bfloat16),
                     preferred_element_type=jnp.float32) + params["by3"][0]
    assert jnp.allclose(pred_x, px_ref, atol=1e-4, rtol=1e-4), "pred_x mismatch"
    assert jnp.allclose(pred_y, py_ref, atol=1e-4, rtol=1e-4), "pred_y mismatch"

    print("KERNEL_OK")
</pallas_src>

<mosaic_0001>
module attributes {stable_mosaic.version = 11 : i64} {
  func.func @_simcc_fused_kernel(%arg0: i32, %arg1: memref<2x4x16xf32, #tpu.memory_space<vmem>>, %arg2: memref<8x4xf32, #tpu.memory_space<vmem>>, %arg3: memref<8x1xf32, #tpu.memory_space<vmem>>, %arg4: memref<16x256xbf16, #tpu.memory_space<vmem>>, %arg5: memref<1x256xf32, #tpu.memory_space<vmem>>, %arg6: memref<128x128xbf16, #tpu.memory_space<vmem>>, %arg7: memref<1x128xf32, #tpu.memory_space<vmem>>, %arg8: memref<128x128xbf16, #tpu.memory_space<vmem>>, %arg9: memref<1x128xf32, #tpu.memory_space<vmem>>, %arg10: memref<16x16xf32, #tpu.memory_space<vmem>>, %arg11: memref<16x128xf32, #tpu.memory_space<vmem>>, %arg12: memref<16x128xf32, #tpu.memory_space<vmem>>) attributes {dimension_semantics = [#tpu.dimension_semantics<parallel>], iteration_bounds = array<i64: 1>, scalar_prefetch = 0 : i64, scratch_operands = 0 : i64, tpu.core_type = #tpu.core_type<tc>, window_params = [{transform_indices = @transform_0, window_bounds = array<i64: 2, 4, 16>}, {pipeline_mode = #tpu.pipeline_mode<synchronous>, transform_indices = @transform_1, window_bounds = array<i64: 8, 4>}, {pipeline_mode = #tpu.pipeline_mode<synchronous>, transform_indices = @transform_2, window_bounds = array<i64: 8, 1>}, {pipeline_mode = #tpu.pipeline_mode<synchronous>, transform_indices = @transform_3, window_bounds = array<i64: 16, 256>}, {pipeline_mode = #tpu.pipeline_mode<synchronous>, transform_indices = @transform_4, window_bounds = array<i64: 1, 256>}, {pipeline_mode = #tpu.pipeline_mode<synchronous>, transform_indices = @transform_5, window_bounds = array<i64: 128, 128>}, {pipeline_mode = #tpu.pipeline_mode<synchronous>, transform_indices = @transform_6, window_bounds = array<i64: 1, 128>}, {pipeline_mode = #tpu.pipeline_mode<synchronous>, transform_indices = @transform_7, window_bounds = array<i64: 128, 128>}, {pipeline_mode = #tpu.pipeline_mode<synchronous>, transform_indices = @transform_8, window_bounds = array<i64: 1, 128>}, {transform_indices = @transform_9, window_bounds = array<i64: 16, 16>}, {transform_indices = @transform_10, window_bounds = array<i64: 16, 128>}, {transform_indices = @transform_11, window_bounds = array<i64: 16, 128>}]} {
    %c0 = arith.constant 0 : index
    %c0_0 = arith.constant 0 : index
    %c0_1 = arith.constant 0 : index
    %0 = vector.load %arg1[%c0, %c0_0, %c0_1] : memref<2x4x16xf32, #tpu.memory_space<vmem>>, vector<2x4x16xf32>
    %c0_2 = arith.constant 0 : index
    %c0_3 = arith.constant 0 : index
    %1 = vector.load %arg2[%c0_2, %c0_3] : memref<8x4xf32, #tpu.memory_space<vmem>>, vector<8x4xf32>
    %cst = arith.constant 0.000000e+00 : f32
    %2 = vector.broadcast %cst : f32 to vector<2x8x16xf32>
    %3 = vector.extract_strided_slice %0 {offsets = [0, 0, 0], sizes = [2, 1, 16], strides = [1, 1, 1]} : vector<2x4x16xf32> to vector<2x1x16xf32>
    %4 = vector.extract_strided_slice %1 {offsets = [0, 0], sizes = [8, 1], strides = [1, 1]} : vector<8x4xf32> to vector<8x1xf32>
    %5 = vector.shape_cast %4 : vector<8x1xf32> to vector<1x8x1xf32>
    %6 = vector.broadcast %3 : vector<2x1x16xf32> to vector<2x8x16xf32>
    %7 = vector.broadcast %5 : vector<1x8x1xf32> to vector<2x8x16xf32>
    %8 = arith.mulf %6, %7 : vector<2x8x16xf32>
    %9 = arith.addf %2, %8 : vector<2x8x16xf32>
    %10 = vector.extract_strided_slice %0 {offsets = [0, 1, 0], sizes = [2, 1, 16], strides = [1, 1, 1]} : vector<2x4x16xf32> to vector<2x1x16xf32>
    %11 = vector.extract_strided_slice %1 {offsets = [0, 1], sizes = [8, 1], strides = [1, 1]} : vector<8x4xf32> to vector<8x1xf32>
    %12 = vector.shape_cast %11 : vector<8x1xf32> to vector<1x8x1xf32>
    %13 = vector.broadcast %10 : vector<2x1x16xf32> to vector<2x8x16xf32>
    %14 = vector.broadcast %12 : vector<1x8x1xf32> to vector<2x8x16xf32>
    %15 = arith.mulf %13, %14 : vector<2x8x16xf32>
    %16 = arith.addf %9, %15 : vector<2x8x16xf32>
    %17 = vector.extract_strided_slice %0 {offsets = [0, 2, 0], sizes = [2, 1, 16], strides = [1, 1, 1]} : vector<2x4x16xf32> to vector<2x1x16xf32>
    %18 = vector.extract_strided_slice %1 {offsets = [0, 2], sizes = [8, 1], strides = [1, 1]} : vector<8x4xf32> to vector<8x1xf32>
    %19 = vector.shape_cast %18 : vector<8x1xf32> to vector<1x8x1xf32>
    %20 = vector.broadcast %17 : vector<2x1x16xf32> to vector<2x8x16xf32>
    %21 = vector.broadcast %19 : vector<1x8x1xf32> to vector<2x8x16xf32>
    %22 = arith.mulf %20, %21 : vector<2x8x16xf32>
    %23 = arith.addf %16, %22 : vector<2x8x16xf32>
    %24 = vector.extract_strided_slice %0 {offsets = [0, 3, 0], sizes = [2, 1, 16], strides = [1, 1, 1]} : vector<2x4x16xf32> to vector<2x1x16xf32>
    %25 = vector.extract_strided_slice %1 {offsets = [0, 3], sizes = [8, 1], strides = [1, 1]} : vector<8x4xf32> to vector<8x1xf32>
    %26 = vector.shape_cast %25 : vector<8x1xf32> to vector<1x8x1xf32>
    %27 = vector.broadcast %24 : vector<2x1x16xf32> to vector<2x8x16xf32>
    %28 = vector.broadcast %26 : vector<1x8x1xf32> to vector<2x8x16xf32>
    %29 = arith.mulf %27, %28 : vector<2x8x16xf32>
    %30 = arith.addf %23, %29 : vector<2x8x16xf32>
    %c0_4 = arith.constant 0 : index
    %c0_5 = arith.constant 0 : index
    %31 = vector.load %arg3[%c0_4, %c0_5] : memref<8x1xf32, #tpu.memory_space<vmem>>, vector<8x1xf32>
    %32 = vector.shape_cast %31 : vector<8x1xf32> to vector<1x8x1xf32>
    %33 = vector.broadcast %32 : vector<1x8x1xf32> to vector<2x8x16xf32>
    %34 = arith.addf %30, %33 : vector<2x8x16xf32>
    %35 = vector.shape_cast %34 : vector<2x8x16xf32> to vector<16x16xf32>
    %c0_6 = arith.constant 0 : index
    %c0_7 = arith.constant 0 : index
    %36 = vector.load %arg10[%c0_6, %c0_7] : memref<16x16xf32, #tpu.memory_space<vmem>>, vector<16x16xf32>
    tpu.vector_store %arg10[%c0_6, %c0_7], %35 {strides = array<i32>} : memref<16x16xf32, #tpu.memory_space<vmem>>, vector<16x16xf32>,
    %37 = arith.truncf %35 : vector<16x16xf32> to vector<16x16xbf16>
    %c0_8 = arith.constant 0 : index
    %c0_9 = arith.constant 0 : index
    %38 = vector.load %arg4[%c0_8, %c0_9] : memref<16x256xbf16, #tpu.memory_space<vmem>>, vector<16x256xbf16>
    %cst_10 = arith.constant dense<0.000000e+00> : vector<16x256xf32>
    %39 = tpu.matmul %37, %38, %cst_10 {dimension_numbers = #tpu.dot_dimension_numbers<[1], [0], [0], [1], [0, 0, 1, 1], [], []>} : vector<16x16xbf16>, vector<16x256xbf16>, vector<16x256xf32> -> vector<16x256xf32>
    %c0_11 = arith.constant 0 : index
    %c0_12 = arith.constant 0 : index
    %40 = vector.load %arg5[%c0_11, %c0_12] : memref<1x256xf32, #tpu.memory_space<vmem>>, vector<1x256xf32>
    %41 = vector.broadcast %40 : vector<1x256xf32> to vector<16x256xf32>
    %42 = arith.addf %39, %41 : vector<16x256xf32>
    %43 = arith.truncf %42 : vector<16x256xf32> to vector<16x256xbf16>
    %44 = vector.extract_strided_slice %43 {offsets = [0, 0], sizes = [16, 128], strides = [1, 1]} : vector<16x256xbf16> to vector<16x128xbf16>
    %c0_13 = arith.constant 0 : index
    %c0_14 = arith.constant 0 : index
    %45 = vector.load %arg6[%c0_13, %c0_14] : memref<128x128xbf16, #tpu.memory_space<vmem>>, vector<128x128xbf16>
    %cst_15 = arith.constant dense<0.000000e+00> : vector<16x128xf32>
    %46 = tpu.matmul %44, %45, %cst_15 {dimension_numbers = #tpu.dot_dimension_numbers<[1], [0], [0], [1], [0, 0, 1, 1], [], []>} : vector<16x128xbf16>, vector<128x128xbf16>, vector<16x128xf32> -> vector<16x128xf32>
    %c0_16 = arith.constant 0 : index
    %c0_17 = arith.constant 0 : index
    %47 = vector.load %arg7[%c0_16, %c0_17] : memref<1x128xf32, #tpu.memory_space<vmem>>, vector<1x128xf32>
    %48 = vector.broadcast %47 : vector<1x128xf32> to vector<16x128xf32>
    %49 = arith.addf %46, %48 : vector<16x128xf32>
    %c0_18 = arith.constant 0 : index
    %c0_19 = arith.constant 0 : index
    %50 = vector.load %arg11[%c0_18, %c0_19] : memref<16x128xf32, #tpu.memory_space<vmem>>, vector<16x128xf32>
    tpu.vector_store %arg11[%c0_18, %c0_19], %49 {strides = array<i32>} : memref<16x128xf32, #tpu.memory_space<vmem>>, vector<16x128xf32>,
    %51 = vector.extract_strided_slice %43 {offsets = [0, 128], sizes = [16, 128], strides = [1, 1]} : vector<16x256xbf16> to vector<16x128xbf16>
    %c0_20 = arith.constant 0 : index
    %c0_21 = arith.constant 0 : index
    %52 = vector.load %arg8[%c0_20, %c0_21] : memref<128x128xbf16, #tpu.memory_space<vmem>>, vector<128x128xbf16>
    %cst_22 = arith.constant dense<0.000000e+00> : vector<16x128xf32>
    %53 = tpu.matmul %51, %52, %cst_22 {dimension_numbers = #tpu.dot_dimension_numbers<[1], [0], [0], [1], [0, 0, 1, 1], [], []>} : vector<16x128xbf16>, vector<128x128xbf16>, vector<16x128xf32> -> vector<16x128xf32>
    %c0_23 = arith.constant 0 : index
    %c0_24 = arith.constant 0 : index
    %54 = vector.load %arg9[%c0_23, %c0_24] : memref<1x128xf32, #tpu.memory_space<vmem>>, vector<1x128xf32>
    %55 = vector.broadcast %54 : vector<1x128xf32> to vector<16x128xf32>
    %56 = arith.addf %53, %55 : vector<16x128xf32>
    %c0_25 = arith.constant 0 : index
    %c0_26 = arith.constant 0 : index
    %57 = vector.load %arg12[%c0_25, %c0_26] : memref<16x128xf32, #tpu.memory_space<vmem>>, vector<16x128xf32>
    tpu.vector_store %arg12[%c0_25, %c0_26], %56 {strides = array<i32>} : memref<16x128xf32, #tpu.memory_space<vmem>>, vector<16x128xf32>,
    return
  }
  func.func @transform_0(%arg0: i32) -> (i32, i32, i32) {
    %c0_i32 = arith.constant 0 : i32
    %c0_i32_0 = arith.constant 0 : i32
    %c0_i32_1 = arith.constant 0 : i32
    return %arg0, %c0_i32, %c0_i32_0 : i32, i32, i32
  }
  func.func @transform_1(%arg0: i32) -> (i32, i32) {
    %c0_i32 = arith.constant 0 : i32
    %c0_i32_0 = arith.constant 0 : i32
    %c0_i32_1 = arith.constant 0 : i32
    return %c0_i32, %c0_i32_0 : i32, i32
  }
  func.func @transform_2(%arg0: i32) -> (i32, i32) {
    %c0_i32 = arith.constant 0 : i32
    %c0_i32_0 = arith.constant 0 : i32
    %c0_i32_1 = arith.constant 0 : i32
    return %c0_i32, %c0_i32_0 : i32, i32
  }
  func.func @transform_3(%arg0: i32) -> (i32, i32) {
    %c0_i32 = arith.constant 0 : i32
    %c0_i32_0 = arith.constant 0 : i32
    %c0_i32_1 = arith.constant 0 : i32
    return %c0_i32, %c0_i32_0 : i32, i32
  }
  func.func @transform_4(%arg0: i32) -> (i32, i32) {
    %c0_i32 = arith.constant 0 : i32
    %c0_i32_0 = arith.constant 0 : i32
    %c0_i32_1 = arith.constant 0 : i32
    return %c0_i32, %c0_i32_0 : i32, i32
  }
  func.func @transform_5(%arg0: i32) -> (i32, i32) {
    %c0_i32 = arith.constant 0 : i32
    %c0_i32_0 = arith.constant 0 : i32
    %c0_i32_1 = arith.constant 0 : i32
    return %c0_i32, %c0_i32_0 : i32, i32
  }
  func.func @transform_6(%arg0: i32) -> (i32, i32) {
    %c0_i32 = arith.constant 0 : i32
    %c0_i32_0 = arith.constant 0 : i32
    %c0_i32_1 = arith.constant 0 : i32
    return %c0_i32, %c0_i32_0 : i32, i32
  }
  func.func @transform_7(%arg0: i32) -> (i32, i32) {
    %c0_i32 = arith.constant 0 : i32
    %c0_i32_0 = arith.constant 0 : i32
    %c0_i32_1 = arith.constant 0 : i32
    return %c0_i32, %c0_i32_0 : i32, i32
  }
  func.func @transform_8(%arg0: i32) -> (i32, i32) {
    %c0_i32 = arith.constant 0 : i32
    %c0_i32_0 = arith.constant 0 : i32
    %c0_i32_1 = arith.constant 0 : i32
    return %c0_i32, %c0_i32_0 : i32, i32
  }
  func.func @transform_9(%arg0: i32) -> (i32, i32) {
    %c0_i32 = arith.constant 0 : i32
    %c0_i32_0 = arith.constant 0 : i32
    return %arg0, %c0_i32 : i32, i32
  }
  func.func @transform_10(%arg0: i32) -> (i32, i32) {
    %c0_i32 = arith.constant 0 : i32
    %c0_i32_0 = arith.constant 0 : i32
    return %arg0, %c0_i32 : i32, i32
  }
  func.func @transform_11(%arg0: i32) -> (i32, i32) {
    %c0_i32 = arith.constant 0 : i32
    %c0_i32_0 = arith.constant 0 : i32
    return %arg0, %c0_i32 : i32, i32
  }
}

module attributes {stable_mosaic.version = 11 : i64} {
  func.func @_simcc_fused_kernel(%arg0: i32, %arg1: memref<2x4x16xf32, #tpu.memory_space<vmem>>, %arg2: memref<8x4xf32, #tpu.memory_space<vmem>>, %arg3: memref<8x1xf32, #tpu.memory_space<vmem>>, %arg4: memref<16x256xbf16, #tpu.memory_space<vmem>>, %arg5: memref<1x256xf32, #tpu.memory_space<vmem>>, %arg6: memref<128x128xbf16, #tpu.memory_space<vmem>>, %arg7: memref<1x128xf32, #tpu.memory_space<vmem>>, %arg8: memref<128x128xbf16, #tpu.memory_space<vmem>>, %arg9: memref<1x128xf32, #tpu.memory_space<vmem>>, %arg10: memref<16x16xf32, #tpu.memory_space<vmem>>, %arg11: memref<16x128xf32, #tpu.memory_space<vmem>>, %arg12: memref<16x128xf32, #tpu.memory_space<vmem>>) attributes {dimension_semantics = [#tpu.dimension_semantics<parallel>], iteration_bounds = array<i64: 1>, scalar_prefetch = 0 : i64, scratch_operands = 0 : i64, tpu.core_type = #tpu.core_type<tc>, window_params = [{transform_indices = @transform_0, window_bounds = array<i64: 2, 4, 16>}, {pipeline_mode = #tpu.pipeline_mode<synchronous>, transform_indices = @transform_1, window_bounds = array<i64: 8, 4>}, {pipeline_mode = #tpu.pipeline_mode<synchronous>, transform_indices = @transform_2, window_bounds = array<i64: 8, 1>}, {pipeline_mode = #tpu.pipeline_mode<synchronous>, transform_indices = @transform_3, window_bounds = array<i64: 16, 256>}, {pipeline_mode = #tpu.pipeline_mode<synchronous>, transform_indices = @transform_4, window_bounds = array<i64: 1, 256>}, {pipeline_mode = #tpu.pipeline_mode<synchronous>, transform_indices = @transform_5, window_bounds = array<i64: 128, 128>}, {pipeline_mode = #tpu.pipeline_mode<synchronous>, transform_indices = @transform_6, window_bounds = array<i64: 1, 128>}, {pipeline_mode = #tpu.pipeline_mode<synchronous>, transform_indices = @transform_7, window_bounds = array<i64: 128, 128>}, {pipeline_mode = #tpu.pipeline_mode<synchronous>, transform_indices = @transform_8, window_bounds = array<i64: 1, 128>}, {transform_indices = @transform_9, window_bounds = array<i64: 16, 16>}, {transform_indices = @transform_10, window_bounds = array<i64: 16, 128>}, {transform_indices = @transform_11, window_bounds = array<i64: 16, 128>}]} {
    %c0 = arith.constant 0 : index
    %c0_0 = arith.constant 0 : index
    %c0_1 = arith.constant 0 : index
    %0 = vector.load %arg1[%c0, %c0_0, %c0_1] : memref<2x4x16xf32, #tpu.memory_space<vmem>>, vector<2x4x16xf32>
    %c0_2 = arith.constant 0 : index
    %c0_3 = arith.constant 0 : index
    %1 = vector.load %arg2[%c0_2, %c0_3] : memref<8x4xf32, #tpu.memory_space<vmem>>, vector<8x4xf32>
    %cst = arith.constant 0.000000e+00 : f32
    %2 = vector.broadcast %cst : f32 to vector<2x8x16xf32>
    %3 = vector.extract_strided_slice %0 {offsets = [0, 0, 0], sizes = [2, 1, 16], strides = [1, 1, 1]} : vector<2x4x16xf32> to vector<2x1x16xf32>
    %4 = vector.extract_strided_slice %1 {offsets = [0, 0], sizes = [8, 1], strides = [1, 1]} : vector<8x4xf32> to vector<8x1xf32>
    %5 = vector.shape_cast %4 : vector<8x1xf32> to vector<1x8x1xf32>
    %6 = vector.broadcast %3 : vector<2x1x16xf32> to vector<2x8x16xf32>
    %7 = vector.broadcast %5 : vector<1x8x1xf32> to vector<2x8x16xf32>
    %8 = arith.mulf %6, %7 : vector<2x8x16xf32>
    %9 = arith.addf %2, %8 : vector<2x8x16xf32>
    %10 = vector.extract_strided_slice %0 {offsets = [0, 1, 0], sizes = [2, 1, 16], strides = [1, 1, 1]} : vector<2x4x16xf32> to vector<2x1x16xf32>
    %11 = vector.extract_strided_slice %1 {offsets = [0, 1], sizes = [8, 1], strides = [1, 1]} : vector<8x4xf32> to vector<8x1xf32>
    %12 = vector.shape_cast %11 : vector<8x1xf32> to vector<1x8x1xf32>
    %13 = vector.broadcast %10 : vector<2x1x16xf32> to vector<2x8x16xf32>
    %14 = vector.broadcast %12 : vector<1x8x1xf32> to vector<2x8x16xf32>
    %15 = arith.mulf %13, %14 : vector<2x8x16xf32>
    %16 = arith.addf %9, %15 : vector<2x8x16xf32>
    %17 = vector.extract_strided_slice %0 {offsets = [0, 2, 0], sizes = [2, 1, 16], strides = [1, 1, 1]} : vector<2x4x16xf32> to vector<2x1x16xf32>
    %18 = vector.extract_strided_slice %1 {offsets = [0, 2], sizes = [8, 1], strides = [1, 1]} : vector<8x4xf32> to vector<8x1xf32>
    %19 = vector.shape_cast %18 : vector<8x1xf32> to vector<1x8x1xf32>
    %20 = vector.broadcast %17 : vector<2x1x16xf32> to vector<2x8x16xf32>
    %21 = vector.broadcast %19 : vector<1x8x1xf32> to vector<2x8x16xf32>
    %22 = arith.mulf %20, %21 : vector<2x8x16xf32>
    %23 = arith.addf %16, %22 : vector<2x8x16xf32>
    %24 = vector.extract_strided_slice %0 {offsets = [0, 3, 0], sizes = [2, 1, 16], strides = [1, 1, 1]} : vector<2x4x16xf32> to vector<2x1x16xf32>
    %25 = vector.extract_strided_slice %1 {offsets = [0, 3], sizes = [8, 1], strides = [1, 1]} : vector<8x4xf32> to vector<8x1xf32>
    %26 = vector.shape_cast %25 : vector<8x1xf32> to vector<1x8x1xf32>
    %27 = vector.broadcast %24 : vector<2x1x16xf32> to vector<2x8x16xf32>
    %28 = vector.broadcast %26 : vector<1x8x1xf32> to vector<2x8x16xf32>
    %29 = arith.mulf %27, %28 : vector<2x8x16xf32>
    %30 = arith.addf %23, %29 : vector<2x8x16xf32>
    %c0_4 = arith.constant 0 : index
    %c0_5 = arith.constant 0 : index
    %31 = vector.load %arg3[%c0_4, %c0_5] : memref<8x1xf32, #tpu.memory_space<vmem>>, vector<8x1xf32>
    %32 = vector.shape_cast %31 : vector<8x1xf32> to vector<1x8x1xf32>
    %33 = vector.broadcast %32 : vector<1x8x1xf32> to vector<2x8x16xf32>
    %34 = arith.addf %30, %33 : vector<2x8x16xf32>
    %35 = vector.shape_cast %34 : vector<2x8x16xf32> to vector<16x16xf32>
    %c0_6 = arith.constant 0 : index
    %c0_7 = arith.constant 0 : index
    %36 = vector.load %arg10[%c0_6, %c0_7] : memref<16x16xf32, #tpu.memory_space<vmem>>, vector<16x16xf32>
    tpu.vector_store %arg10[%c0_6, %c0_7], %35 {strides = array<i32>} : memref<16x16xf32, #tpu.memory_space<vmem>>, vector<16x16xf32>,
    %37 = arith.truncf %35 : vector<16x16xf32> to vector<16x16xbf16>
    %c0_8 = arith.constant 0 : index
    %c0_9 = arith.constant 0 : index
    %38 = vector.load %arg4[%c0_8, %c0_9] : memref<16x256xbf16, #tpu.memory_space<vmem>>, vector<16x256xbf16>
    %cst_10 = arith.constant dense<0.000000e+00> : vector<16x256xf32>
    %39 = tpu.matmul %37, %38, %cst_10 {dimension_numbers = #tpu.dot_dimension_numbers<[1], [0], [0], [1], [0, 0, 1, 1], [], []>} : vector<16x16xbf16>, vector<16x256xbf16>, vector<16x256xf32> -> vector<16x256xf32>
    %c0_11 = arith.constant 0 : index
    %c0_12 = arith.constant 0 : index
    %40 = vector.load %arg5[%c0_11, %c0_12] : memref<1x256xf32, #tpu.memory_space<vmem>>, vector<1x256xf32>
    %41 = vector.broadcast %40 : vector<1x256xf32> to vector<16x256xf32>
    %42 = arith.addf %39, %41 : vector<16x256xf32>
    %43 = arith.truncf %42 : vector<16x256xf32> to vector<16x256xbf16>
    %44 = vector.extract_strided_slice %43 {offsets = [0, 0], sizes = [16, 128], strides = [1, 1]} : vector<16x256xbf16> to vector<16x128xbf16>
    %c0_13 = arith.constant 0 : index
    %c0_14 = arith.constant 0 : index
    %45 = vector.load %arg6[%c0_13, %c0_14] : memref<128x128xbf16, #tpu.memory_space<vmem>>, vector<128x128xbf16>
    %cst_15 = arith.constant dense<0.000000e+00> : vector<16x128xf32>
    %46 = tpu.matmul %44, %45, %cst_15 {dimension_numbers = #tpu.dot_dimension_numbers<[1], [0], [0], [1], [0, 0, 1, 1], [], []>} : vector<16x128xbf16>, vector<128x128xbf16>, vector<16x128xf32> -> vector<16x128xf32>
    %c0_16 = arith.constant 0 : index
    %c0_17 = arith.constant 0 : index
    %47 = vector.load %arg7[%c0_16, %c0_17] : memref<1x128xf32, #tpu.memory_space<vmem>>, vector<1x128xf32>
    %48 = vector.broadcast %47 : vector<1x128xf32> to vector<16x128xf32>
    %49 = arith.addf %46, %48 : vector<16x128xf32>
    %c0_18 = arith.constant 0 : index
    %c0_19 = arith.constant 0 : index
    %50 = vector.load %arg11[%c0_18, %c0_19] : memref<16x128xf32, #tpu.memory_space<vmem>>, vector<16x128xf32>
    tpu.vector_store %arg11[%c0_18, %c0_19], %49 {strides = array<i32>} : memref<16x128xf32, #tpu.memory_space<vmem>>, vector<16x128xf32>,
    %51 = vector.extract_strided_slice %43 {offsets = [0, 128], sizes = [16, 128], strides = [1, 1]} : vector<16x256xbf16> to vector<16x128xbf16>
    %c0_20 = arith.constant 0 : index
    %c0_21 = arith.constant 0 : index
    %52 = vector.load %arg8[%c0_20, %c0_21] : memref<128x128xbf16, #tpu.memory_space<vmem>>, vector<128x128xbf16>
    %cst_22 = arith.constant dense<0.000000e+00> : vector<16x128xf32>
    %53 = tpu.matmul %51, %52, %cst_22 {dimension_numbers = #tpu.dot_dimension_numbers<[1], [0], [0], [1], [0, 0, 1, 1], [], []>} : vector<16x128xbf16>, vector<128x128xbf16>, vector<16x128xf32> -> vector<16x128xf32>
    %c0_23 = arith.constant 0 : index
    %c0_24 = arith.constant 0 : index
    %54 = vector.load %arg9[%c0_23, %c0_24] : memref<1x128xf32, #tpu.memory_space<vmem>>, vector<1x128xf32>
    %55 = vector.broadcast %54 : vector<1x128xf32> to vector<16x128xf32>
    %56 = arith.addf %53, %55 : vector<16x128xf32>
    %c0_25 = arith.constant 0 : index
    %c0_26 = arith.constant 0 : index
    %57 = vector.load %arg12[%c0_25, %c0_26] : memref<16x128xf32, #tpu.memory_space<vmem>>, vector<16x128xf32>
    tpu.vector_store %arg12[%c0_25, %c0_26], %56 {strides = array<i32>} : memref<16x128xf32, #tpu.memory_space<vmem>>, vector<16x128xf32>,
    return
  }
  func.func @transform_0(%arg0: i32) -> (i32, i32, i32) {
    %c0_i32 = arith.constant 0 : i32
    %c0_i32_0 = arith.constant 0 : i32
    %c0_i32_1 = arith.constant 0 : i32
    return %arg0, %c0_i32, %c0_i32_0 : i32, i32, i32
  }
  func.func @transform_1(%arg0: i32) -> (i32, i32) {
    %c0_i32 = arith.constant 0 : i32
    %c0_i32_0 = arith.constant 0 : i32
    %c0_i32_1 = arith.constant 0 : i32
    return %c0_i32, %c0_i32_0 : i32, i32
  }
  func.func @transform_2(%arg0: i32) -> (i32, i32) {
    %c0_i32 = arith.constant 0 : i32
    %c0_i32_0 = arith.constant 0 : i32
    %c0_i32_1 = arith.constant 0 : i32
    return %c0_i32, %c0_i32_0 : i32, i32
  }
  func.func @transform_3(%arg0: i32) -> (i32, i32) {
    %c0_i32 = arith.constant 0 : i32
    %c0_i32_0 = arith.constant 0 : i32
    %c0_i32_1 = arith.constant 0 : i32
    return %c0_i32, %c0_i32_0 : i32, i32
  }
  func.func @transform_4(%arg0: i32) -> (i32, i32) {
    %c0_i32 = arith.constant 0 : i32
    %c0_i32_0 = arith.constant 0 : i32
    %c0_i32_1 = arith.constant 0 : i32
    return %c0_i32, %c0_i32_0 : i32, i32
  }
  func.func @transform_5(%arg0: i32) -> (i32, i32) {
    %c0_i32 = arith.constant 0 : i32
    %c0_i32_0 = arith.constant 0 : i32
    %c0_i32_1 = arith.constant 0 : i32
    return %c0_i32, %c0_i32_0 : i32, i32
  }
  func.func @transform_6(%arg0: i32) -> (i32, i32) {
    %c0_i32 = arith.constant 0 : i32
    %c0_i32_0 = arith.constant 0 : i32
    %c0_i32_1 = arith.constant 0 : i32
    return %c0_i32, %c0_i32_0 : i32, i32
  }
  func.func @transform_7(%arg0: i32) -> (i32, i32) {
    %c0_i32 = arith.constant 0 : i32
    %c0_i32_0 = arith.constant 0 : i32
    %c0_i32_1 = arith.constant 0 : i32
    return %c0_i32, %c0_i32_0 : i32, i32
  }
  func.func @transform_8(%arg0: i32) -> (i32, i32) {
    %c0_i32 = arith.constant 0 : i32
    %c0_i32_0 = arith.constant 0 : i32
    %c0_i32_1 = arith.constant 0 : i32
    return %c0_i32, %c0_i32_0 : i32, i32
  }
  func.func @transform_9(%arg0: i32) -> (i32, i32) {
    %c0_i32 = arith.constant 0 : i32
    %c0_i32_0 = arith.constant 0 : i32
    return %arg0, %c0_i32 : i32, i32
  }
  func.func @transform_10(%arg0: i32) -> (i32, i32) {
    %c0_i32 = arith.constant 0 : i32
    %c0_i32_0 = arith.constant 0 : i32
    return %arg0, %c0_i32 : i32, i32
  }
  func.func @transform_11(%arg0: i32) -> (i32, i32) {
    %c0_i32 = arith.constant 0 : i32
    %c0_i32_0 = arith.constant 0 : i32
    return %arg0, %c0_i32 : i32, i32
  }
}

</mosaic_0001>

<llo_original>
// kernel: _forward_impl.1
$region0: #{_forward_impl.1}
  #allocation0 [shape = 'u32[]', space=smem, size = 0x4, offset = 0x4, fixed_abs, tag = 'smem constant byte address 0x4 - core index']
  #allocation1 [shape = 'u32[144,128]{1,0:T(1,128)}', space=vmem, size = 0x12000, scoped, tag = 'internal scratch']
  %s0 = inlined_call_operand.vmem [shape: f32[2,4,16], index: 0, kind: input, shape index: {}]
  %s1 = inlined_call_operand.vmem [shape: f32[8,4], index: 1, kind: input, shape index: {}]
  %s2 = inlined_call_operand.vmem [shape: f32[8,1], index: 2, kind: input, shape index: {}]
  %s3 = inlined_call_operand.vmem [shape: bf16[16,256], index: 3, kind: input, shape index: {}]
  %s4 = inlined_call_operand.hbm [shape: f32[1,256], index: 4, kind: input, shape index: {}]
  %s5 = inlined_call_operand.vmem [shape: bf16[128,128], index: 5, kind: input, shape index: {}]
  %s6 = inlined_call_operand.vmem [shape: f32[1,128], index: 6, kind: input, shape index: {}]
  %s7 = inlined_call_operand.vmem [shape: bf16[128,128], index: 7, kind: input, shape index: {}]
  %s8 = inlined_call_operand.vmem [shape: f32[1,128], index: 8, kind: input, shape index: {}]
  %s9 = inlined_call_operand.vmem [shape: f32[16,16], index: 9, kind: output, shape index: {0}]
  %s10 = inlined_call_operand.vmem [shape: f32[16,128], index: 10, kind: output, shape index: {1}]
  %s11 = inlined_call_operand.vmem [shape: f32[16,128], index: 11, kind: output, shape index: {2}]
  %12 = xla_tuple %s9, %s10, %s11
  %s13 = sld [smem:[#allocation0]]
  $region66: #{_forward_impl.1} parent=0
    _
  %s15 = ssub.s32 1, %s13
  %s16 = scalar_select 0, %s15, %s13
  $region1: #{_forward_impl.1} parent=0
    #allocation2 [shape = 'u8[1024]{0}', space=vmem, size = 0x400, scoped, tag = 'input window, operand 4, single buffered']
    #allocation3 [shape = 's32[1]{0}', space=sflag, size = 0x4, scoped, tag = 'scoped memory for _forward_impl.1']
    %17 = vsyncpa [#allocation3], 0
    // Predicated region
    $region2: #{_forward_impl.1} parent=1 // pred_check
      _
    $region3: #{_forward_impl.1} parent=1 // pred_check_branch
      %19 = sbr.rel (0) target = $region5
    $region4: #{_forward_impl.1} parent=1 // pred_region
      _
    $region5: #{_forward_impl.1} parent=1 // pred_fallthru
      _
    // Predicated region
    $region6: #{_forward_impl.1} parent=1 // pred_check
      _
    $region7: #{_forward_impl.1} parent=1 // pred_check_branch
      %21 = sbr.rel (0) target = $region9
    $region8: #{_forward_impl.1} parent=1 // pred_region
      _
    $region9: #{_forward_impl.1} parent=1 // pred_fallthru
      _
    // Predicated region
    $region10: #{_forward_impl.1} parent=1 // pred_check
      _
    $region11: #{_forward_impl.1} parent=1 // pred_check_branch
      %23 = sbr.rel (0) target = $region13
    $region12: #{_forward_impl.1} parent=1 // pred_region
      _
    $region13: #{_forward_impl.1} parent=1 // pred_fallthru
      _
    // Predicated region
    $region14: #{_forward_impl.1} parent=1 // pred_check
      _
    $region15: #{_forward_impl.1} parent=1 // pred_check_branch
      %25 = sbr.rel (0) target = $region17
    $region16: #{_forward_impl.1} parent=1 // pred_region
      _
    $region17: #{_forward_impl.1} parent=1 // pred_fallthru
      _
    // Predicated region
    $region18: #{_forward_impl.1} parent=1 // pred_check
      _
    $region19: #{_forward_impl.1} parent=1 // pred_check_branch
      %27 = sbr.rel (0) target = $region21
    $region20: #{_forward_impl.1} parent=1 // pred_region
      %s29 = ssub.s32 32, 32
      %30 = vsyncadd [#allocation3], %s29
      %s32 = sshll.u32 [#allocation2], 4
      %s33 = int_to_ptr.vmem [resolvable:$true] %s32
      %35 = dma.hbm_to_vmem [thread:$0]  %s4, 32, %s33, [#allocation3]
    $region21: #{_forward_impl.1} parent=1 // pred_fallthru
      _
    // Predicated region
    $region22: #{_forward_impl.1} parent=1 // pred_check
      _
    $region23: #{_forward_impl.1} parent=1 // pred_check_branch
      %37 = sbr.rel (0) target = $region25
    $region24: #{_forward_impl.1} parent=1 // pred_region
      _
    $region25: #{_forward_impl.1} parent=1 // pred_fallthru
      _
    // Predicated region
    $region26: #{_forward_impl.1} parent=1 // pred_check
      _
    $region27: #{_forward_impl.1} parent=1 // pred_check_branch
      %39 = sbr.rel (0) target = $region29
    $region28: #{_forward_impl.1} parent=1 // pred_region
      _
    $region29: #{_forward_impl.1} parent=1 // pred_fallthru
      _
    // Predicated region
    $region30: #{_forward_impl.1} parent=1 // pred_check
      _
    $region31: #{_forward_impl.1} parent=1 // pred_check_branch
      %41 = sbr.rel (0) target = $region33
    $region32: #{_forward_impl.1} parent=1 // pred_region
      _
    $region33: #{_forward_impl.1} parent=1 // pred_fallthru
      _
    // Predicated region
    $region34: #{_forward_impl.1} parent=1 // pred_check
      _
    $region35: #{_forward_impl.1} parent=1 // pred_check_branch
      %43 = sbr.rel (0) target = $region37
    $region36: #{_forward_impl.1} parent=1 // pred_region
      _
    $region37: #{_forward_impl.1} parent=1 // pred_fallthru
      _
    // Predicated region
    $region38: #{_forward_impl.1} parent=1 // pred_check
      _
    $region39: #{_forward_impl.1} parent=1 // pred_check_branch
      %45 = sbr.rel (0) target = $region41
    $region40: #{_forward_impl.1} parent=1 // pred_region
      %46 = dma.done [#allocation3], 32
    $region41: #{_forward_impl.1} parent=1 // pred_fallthru
      _
    %v48 = vld [vmem:[%s0] sm:$0xf]
    %v49 = vld [vmem:[%s0 + $0x4] sm:$0xf]
    %v50 = vld [vmem:[%s1] sm:$0xff]
    %v51 = vlaneseq
    %v52 = vshrl.u32 %v51, 7
    %v53 = vsub.s32 0, %v52
    %v54 = vrot.slane %v48, %v53
    %v55 = vlaneseq
    %v56 = vshrl.u32 %v55, 7
    %v57 = vsub.s32 0, %v56
    %v58 = vrot.slane %v49, %v57
    %60 = vset.pattern.permute.xlu0 0
    %61 = vperm.xlu0 %60, %v50
    %v62 = vpop.permute.xlu0 %61
    %v64 = vmul.f32 %v54, %v62
    %v65 = vmul.f32 %v58, %v62
    %v66 = vadd.f32 %v64, 0.0
    %v67 = vadd.f32 %v65, 0.0
    %v68 = vlaneseq
    %v69 = vshrl.u32 %v68, 7
    %v70 = vsub.s32 1, %v69
    %v71 = vrot.slane %v48, %v70
    %v72 = vlaneseq
    %v73 = vshrl.u32 %v72, 7
    %v74 = vsub.s32 1, %v73
    %v75 = vrot.slane %v49, %v74
    %76 = vset.pattern.permute.xlu0 1
    %77 = vperm.xlu0 %76, %v50
    %v78 = vpop.permute.xlu0 %77
    %v80 = vmul.f32 %v71, %v78
    %v81 = vmul.f32 %v75, %v78
    %v82 = vadd.f32 %v66, %v80
    %v83 = vadd.f32 %v67, %v81
    %v84 = vlaneseq
    %v85 = vshrl.u32 %v84, 7
    %v86 = vsub.s32 2, %v85
    %v87 = vrot.slane %v48, %v86
    %v88 = vlaneseq
    %v89 = vshrl.u32 %v88, 7
    %v90 = vsub.s32 2, %v89
    %v91 = vrot.slane %v49, %v90
    %92 = vset.pattern.permute.xlu0 2
    %93 = vperm.xlu0 %92, %v50
    %v94 = vpop.permute.xlu0 %93
    %v96 = vmul.f32 %v87, %v94
    %v97 = vmul.f32 %v91, %v94
    %v98 = vadd.f32 %v82, %v96
    %v99 = vadd.f32 %v83, %v97
    %v100 = vlaneseq
    %v101 = vshrl.u32 %v100, 7
    %v102 = vsub.s32 3, %v101
    %v103 = vrot.slane %v48, %v102
    %v104 = vlaneseq
    %v105 = vshrl.u32 %v104, 7
    %v106 = vsub.s32 3, %v105
    %v107 = vrot.slane %v49, %v106
    %108 = vset.pattern.permute.xlu0 3
    %109 = vperm.xlu0 %108, %v50
    %v110 = vpop.permute.xlu0 %109
    %v112 = vmul.f32 %v103, %v110
    %v113 = vmul.f32 %v107, %v110
    %v114 = vadd.f32 %v98, %v112
    %v115 = vadd.f32 %v99, %v113
    %v116 = vld [vmem:[%s2] sm:$0xff]
    %118 = vset.pattern.permute.xlu0 0
    %119 = vperm.xlu0 %118, %v116
    %v120 = vpop.permute.xlu0 %119
    %v122 = vadd.f32 %v114, %v120
    %v123 = vadd.f32 %v115, %v120
    %vm124 = vcmask 130048
    %125 = vst.msk [vmem:[%s9] sm:$0xff] %vm124, %v122
    %126 = vst.msk [vmem:[%s9 + $0x8] sm:$0xff] %vm124, %v123
    %v127 = vpack.c.bf16 %v123, %v122
    %v128 = vld [vmem:[%s3] sm:$0xff]
    %v129 = vld [vmem:[%s3 + $0x8] sm:$0xff]
    %v130 = vld [vmem:[#allocation2] sm:$0x3]
    %v132 = vlaneseq
    %v133 = vshrl.u32 %v132, 7
    %v134 = vsub.s32 0, %v133
    %v135 = vrot.slane %v130, %v134
    %v136 = vlaneseq
    %v137 = vshrl.u32 %v136, 7
    %v138 = vsub.s32 1, %v137
    %v139 = vrot.slane %v130, %v138
    %v144 = vunpack.c.l.b16 %v128
    %v145 = vunpack.c.h.b16 %v128
    %v146 = vunpack.c.l.b16 %v129
    %v147 = vunpack.c.h.b16 %v129
    %v148 = vpack.c.b16 %v146, %v144
    %v149 = vpack.c.b16 %v147, %v145
    %v153 = vsel %vm124, %v127, 0
    %155 = vmatprep.subr.bf16.mxu0 %v149
    %156 = vmatpush1.bf16.msra.mxu0 %v148
    %157 = vmatprep.subr.bf16.mxu0 0
    %158 = vmatpush1.bf16.msra.mxu0 0
    %159 = vmatprep.subr.bf16.mxu0 0
    %160 = vmatpush1.bf16.msra.mxu0 0
    %161 = vmatprep.subr.bf16.mxu0 0
    %162 = vmatpush1.bf16.msra.mxu0 0
    %163 = vmatprep.subr.bf16.mxu0 0
    %164 = vmatpush1.bf16.msra.mxu0 0
    %165 = vmatprep.subr.bf16.mxu0 0
    %166 = vmatpush1.bf16.msra.mxu0 0
    %167 = vmatprep.subr.bf16.mxu0 0
    %168 = vmatpush1.bf16.msra.mxu0 0
    %169 = vmatprep.subr.bf16.mxu0 0
    %170 = vmatpush1.bf16.msra.mxu0 0
    %171 = vmatprep.subr.bf16.mxu0 0
    %172 = vmatpush1.bf16.msra.mxu0 0
    %173 = vmatprep.subr.bf16.mxu0 0
    %174 = vmatpush1.bf16.msra.mxu0 0
    %175 = vmatprep.subr.bf16.mxu0 0
    %176 = vmatpush1.bf16.msra.mxu0 0
    %177 = vmatprep.subr.bf16.mxu0 0
    %178 = vmatpush1.bf16.msra.mxu0 0
    %179 = vmatprep.subr.bf16.mxu0 0
    %180 = vmatpush1.bf16.msra.mxu0 0
    %181 = vmatprep.subr.bf16.mxu0 0
    %182 = vmatpush1.bf16.msra.mxu0 0
    %183 = vmatprep.subr.bf16.mxu0 0
    %184 = vmatpush1.bf16.msra.mxu0 0
    %185 = vmatprep.subr.bf16.mxu0 0
    %186 = vmatpush1.bf16.msra.mxu0 0
    %187 = vmatprep.mubr.bf16.mxu0 0
    %188 = vmatmul.mubr.bf16.gmra.mrb[0].mxu0 %v153
    %v189 = vpop.f32.mrb[0].mxu0
    %v190 = vadd.f32 %v135, %v189
    %v191 = vpop.f32.mrb[0].mxu0
    %v192 = vadd.f32 %v139, %v191
    %v193 = vpop.f32.mrb[0].mxu0
    %v194 = vadd.f32 %v135, %v193
    %v195 = vpop.f32.mrb[0].mxu0
    %v196 = vadd.f32 %v139, %v195
    %197 = vdwg.mxu0
    %v198 = vpack.c.bf16 %v194, %v190
    %v199 = vpack.c.bf16 %v196, %v192
    %v200 = vld [vmem:[%s5] sm:$0xf]
    %v201 = vld [vmem:[%s5 + $0x4] sm:$0xf]
    %v202 = vld [vmem:[%s5 + $0x8] sm:$0xf]
    %v203 = vld [vmem:[%s5 + $0xc] sm:$0xf]
    %v204 = vld [vmem:[%s5 + $0x10] sm:$0xf]
    %v205 = vld [vmem:[%s5 + $0x14] sm:$0xf]
    %v206 = vld [vmem:[%s5 + $0x18] sm:$0xf]
    %v207 = vld [vmem:[%s5 + $0x1c] sm:$0xf]
    %v208 = vld [vmem:[%s5 + $0x20] sm:$0xf]
    %v209 = vld [vmem:[%s5 + $0x24] sm:$0xf]
    %v210 = vld [vmem:[%s5 + $0x28] sm:$0xf]
    %v211 = vld [vmem:[%s5 + $0x2c] sm:$0xf]
    %v212 = vld [vmem:[%s5 + $0x30] sm:$0xf]
    %v213 = vld [vmem:[%s5 + $0x34] sm:$0xf]
    %v214 = vld [vmem:[%s5 + $0x38] sm:$0xf]
    %v215 = vld [vmem:[%s5 + $0x3c] sm:$0xf]
    %v216 = vld [vmem:[%s6] sm:$0x1]
    %v218 = vlaneseq
    %v219 = vshrl.u32 %v218, 7
    %v220 = vsub.s32 0, %v219
    %v221 = vrot.slane %v216, %v220
    %v239 = vunpack.c.l.b16 %v200
    %v240 = vunpack.c.l.b16 %v201
    %v241 = vunpack.c.l.b16 %v202
    %v242 = vunpack.c.l.b16 %v203
    %v243 = vunpack.c.l.b16 %v204
    %v244 = vunpack.c.l.b16 %v205
    %v245 = vunpack.c.l.b16 %v206
    %v246 = vunpack.c.l.b16 %v207
    %v247 = vunpack.c.l.b16 %v208
    %v248 = vunpack.c.l.b16 %v209
    %v249 = vunpack.c.l.b16 %v210
    %v250 = vunpack.c.l.b16 %v211
    %v251 = vunpack.c.l.b16 %v212
    %v252 = vunpack.c.l.b16 %v213
    %v253 = vunpack.c.l.b16 %v214
    %v254 = vunpack.c.l.b16 %v215
    %v255 = vpack.c.b16 %v240, %v239
    %v256 = vpack.c.b16 %v242, %v241
    %v257 = vpack.c.b16 %v244, %v243
    %v258 = vpack.c.b16 %v246, %v245
    %v259 = vpack.c.b16 %v248, %v247
    %v260 = vpack.c.b16 %v250, %v249
    %v261 = vpack.c.b16 %v252, %v251
    %v262 = vpack.c.b16 %v254, %v253
    %271 = vmatprep.subr.bf16.mxu0 0
    %272 = vmatpush1.bf16.msra.mxu0 %v255
    %273 = vmatprep.subr.bf16.mxu0 0
    %274 = vmatpush1.bf16.msra.mxu0 %v256
    %275 = vmatprep.subr.bf16.mxu0 0
    %276 = vmatpush1.bf16.msra.mxu0 %v257
    %277 = vmatprep.subr.bf16.mxu0 0
    %278 = vmatpush1.bf16.msra.mxu0 %v258
    %279 = vmatprep.subr.bf16.mxu0 0
    %280 = vmatpush1.bf16.msra.mxu0 %v259
    %281 = vmatprep.subr.bf16.mxu0 0
    %282 = vmatpush1.bf16.msra.mxu0 %v260
    %283 = vmatprep.subr.bf16.mxu0 0
    %284 = vmatpush1.bf16.msra.mxu0 %v261
    %285 = vmatprep.subr.bf16.mxu0 0
    %286 = vmatpush1.bf16.msra.mxu0 %v262
    %287 = vmatprep.subr.bf16.mxu0 0
    %288 = vmatpush1.bf16.msra.mxu0 0
    %289 = vmatprep.subr.bf16.mxu0 0
    %290 = vmatpush1.bf16.msra.mxu0 0
    %291 = vmatprep.subr.bf16.mxu0 0
    %292 = vmatpush1.bf16.msra.mxu0 0
    %293 = vmatprep.subr.bf16.mxu0 0
    %294 = vmatpush1.bf16.msra.mxu0 0
    %295 = vmatprep.subr.bf16.mxu0 0
    %296 = vmatpush1.bf16.msra.mxu0 0
    %297 = vmatprep.subr.bf16.mxu0 0
    %298 = vmatpush1.bf16.msra.mxu0 0
    %299 = vmatprep.subr.bf16.mxu0 0
    %300 = vmatpush1.bf16.msra.mxu0 0
    %301 = vmatprep.subr.bf16.mxu0 0
    %302 = vmatpush1.bf16.msra.mxu0 0
    %303 = vmatprep.mubr.bf16.mxu0 0
    %304 = vmatmul.mubr.bf16.gmra.mrb[0].mxu0 %v198
    %v305 = vpop.f32.mrb[0].mxu0
    %v306 = vadd.f32 %v221, %v305
    %v307 = vpop.f32.mrb[0].mxu0
    %v308 = vpop.f32.mrb[0].mxu0
    %v309 = vadd.f32 %v221, %v308
    %v310 = vpop.f32.mrb[0].mxu0
    %311 = vdwg.mxu0
    %312 = vst [vmem:[%s10] sm:$0xff] %v306
    %313 = vst [vmem:[%s10 + $0x8] sm:$0xff] %v309
    %v314 = vld [vmem:[%s7] sm:$0xf]
    %v315 = vld [vmem:[%s7 + $0x4] sm:$0xf]
    %v316 = vld [vmem:[%s7 + $0x8] sm:$0xf]
    %v317 = vld [vmem:[%s7 + $0xc] sm:$0xf]
    %v318 = vld [vmem:[%s7 + $0x10] sm:$0xf]
    %v319 = vld [vmem:[%s7 + $0x14] sm:$0xf]
    %v320 = vld [vmem:[%s7 + $0x18] sm:$0xf]
    %v321 = vld [vmem:[%s7 + $0x1c] sm:$0xf]
    %v322 = vld [vmem:[%s7 + $0x20] sm:$0xf]
    %v323 = vld [vmem:[%s7 + $0x24] sm:$0xf]
    %v324 = vld [vmem:[%s7 + $0x28] sm:$0xf]
    %v325 = vld [vmem:[%s7 + $0x2c] sm:$0xf]
    %v326 = vld [vmem:[%s7 + $0x30] sm:$0xf]
    %v327 = vld [vmem:[%s7 + $0x34] sm:$0xf]
    %v328 = vld [vmem:[%s7 + $0x38] sm:$0xf]
    %v329 = vld [vmem:[%s7 + $0x3c] sm:$0xf]
    %v330 = vld [vmem:[%s8] sm:$0x1]
    %v332 = vlaneseq
    %v333 = vshrl.u32 %v332, 7
    %v334 = vsub.s32 0, %v333
    %v335 = vrot.slane %v330, %v334
    %v353 = vunpack.c.l.b16 %v314
    %v354 = vunpack.c.l.b16 %v315
    %v355 = vunpack.c.l.b16 %v316
    %v356 = vunpack.c.l.b16 %v317
    %v357 = vunpack.c.l.b16 %v318
    %v358 = vunpack.c.l.b16 %v319
    %v359 = vunpack.c.l.b16 %v320
    %v360 = vunpack.c.l.b16 %v321
    %v361 = vunpack.c.l.b16 %v322
    %v362 = vunpack.c.l.b16 %v323
    %v363 = vunpack.c.l.b16 %v324
    %v364 = vunpack.c.l.b16 %v325
    %v365 = vunpack.c.l.b16 %v326
    %v366 = vunpack.c.l.b16 %v327
    %v367 = vunpack.c.l.b16 %v328
    %v368 = vunpack.c.l.b16 %v329
    %v369 = vpack.c.b16 %v354, %v353
    %v370 = vpack.c.b16 %v356, %v355
    %v371 = vpack.c.b16 %v358, %v357
    %v372 = vpack.c.b16 %v360, %v359
    %v373 = vpack.c.b16 %v362, %v361
    %v374 = vpack.c.b16 %v364, %v363
    %v375 = vpack.c.b16 %v366, %v365
    %v376 = vpack.c.b16 %v368, %v367
    %385 = vmatprep.subr.bf16.mxu0 0
    %386 = vmatpush1.bf16.msra.mxu0 %v369
    %387 = vmatprep.subr.bf16.mxu0 0
    %388 = vmatpush1.bf16.msra.mxu0 %v370
    %389 = vmatprep.subr.bf16.mxu0 0
    %390 = vmatpush1.bf16.msra.mxu0 %v371
    %391 = vmatprep.subr.bf16.mxu0 0
    %392 = vmatpush1.bf16.msra.mxu0 %v372
    %393 = vmatprep.subr.bf16.mxu0 0
    %394 = vmatpush1.bf16.msra.mxu0 %v373
    %395 = vmatprep.subr.bf16.mxu0 0
    %396 = vmatpush1.bf16.msra.mxu0 %v374
    %397 = vmatprep.subr.bf16.mxu0 0
    %398 = vmatpush1.bf16.msra.mxu0 %v375
    %399 = vmatprep.subr.bf16.mxu0 0
    %400 = vmatpush1.bf16.msra.mxu0 %v376
    %401 = vmatprep.subr.bf16.mxu0 0
    %402 = vmatpush1.bf16.msra.mxu0 0
    %403 = vmatprep.subr.bf16.mxu0 0
    %404 = vmatpush1.bf16.msra.mxu0 0
    %405 = vmatprep.subr.bf16.mxu0 0
    %406 = vmatpush1.bf16.msra.mxu0 0
    %407 = vmatprep.subr.bf16.mxu0 0
    %408 = vmatpush1.bf16.msra.mxu0 0
    %409 = vmatprep.subr.bf16.mxu0 0
    %410 = vmatpush1.bf16.msra.mxu0 0
    %411 = vmatprep.subr.bf16.mxu0 0
    %412 = vmatpush1.bf16.msra.mxu0 0
    %413 = vmatprep.subr.bf16.mxu0 0
    %414 = vmatpush1.bf16.msra.mxu0 0
    %415 = vmatprep.subr.bf16.mxu0 0
    %416 = vmatpush1.bf16.msra.mxu0 0
    %417 = vmatprep.mubr.bf16.mxu0 0
    %418 = vmatmul.mubr.bf16.gmra.mrb[0].mxu0 %v199
    %v419 = vpop.f32.mrb[0].mxu0
    %v420 = vadd.f32 %v335, %v419
    %v421 = vpop.f32.mrb[0].mxu0
    %v422 = vpop.f32.mrb[0].mxu0
    %v423 = vadd.f32 %v335, %v422
    %v424 = vpop.f32.mrb[0].mxu0
    %425 = vdwg.mxu0
    %426 = vst [vmem:[%s11] sm:$0xff] %v420
    %427 = vst [vmem:[%s11 + $0x8] sm:$0xff] %v423
    // Predicated region
    $region42: #{_forward_impl.1} parent=1 // pred_check
      _
    $region43: #{_forward_impl.1} parent=1 // pred_check_branch
      %429 = sbr.rel (0) target = $region45
    $region44: #{_forward_impl.1} parent=1 // pred_region
      _
    $region45: #{_forward_impl.1} parent=1 // pred_fallthru
      _
    // Predicated region
    $region46: #{_forward_impl.1} parent=1 // pred_check
      _
    $region47: #{_forward_impl.1} parent=1 // pred_check_branch
      %431 = sbr.rel (0) target = $region49
    $region48: #{_forward_impl.1} parent=1 // pred_region
      _
    $region49: #{_forward_impl.1} parent=1 // pred_fallthru
      _
    // Predicated region
    $region50: #{_forward_impl.1} parent=1 // pred_check
      _
    $region51: #{_forward_impl.1} parent=1 // pred_check_branch
      %433 = sbr.rel (0) target = $region53
    $region52: #{_forward_impl.1} parent=1 // pred_region
      _
    $region53: #{_forward_impl.1} parent=1 // pred_fallthru
      _
    // Predicated region
    $region54: #{_forward_impl.1} parent=1 // pred_check
      _
    $region55: #{_forward_impl.1} parent=1 // pred_check_branch
      %435 = sbr.rel (0) target = $region57
    $region56: #{_forward_impl.1} parent=1 // pred_region
      _
    $region57: #{_forward_impl.1} parent=1 // pred_fallthru
      _
    // Predicated region
    $region58: #{_forward_impl.1} parent=1 // pred_check
      _
    $region59: #{_forward_impl.1} parent=1 // pred_check_branch
      %437 = sbr.rel (0) target = $region61
    $region60: #{_forward_impl.1} parent=1 // pred_region
      _
    $region61: #{_forward_impl.1} parent=1 // pred_fallthru
      _
    // Predicated region
    $region62: #{_forward_impl.1} parent=1 // pred_check
      _
    $region63: #{_forward_impl.1} parent=1 // pred_check_branch
      %439 = sbr.rel (0) target = $region65
    $region64: #{_forward_impl.1} parent=1 // pred_region
      _
    $region65: #{_forward_impl.1} parent=1 // pred_fallthru
      _
    %440 = vsyncpa [#allocation3], 1

// kernel: _forward_impl.1
$region0: #{_forward_impl.1}
  #allocation0 [shape = 'u32[]', space=smem, size = 0x4, offset = 0x4, fixed_abs, tag = 'smem constant byte address 0x4 - core index']
  #allocation1 [shape = 'u32[144,128]{1,0:T(1,128)}', space=vmem, size = 0x12000, scoped, tag = 'internal scratch']
  %s0 = inlined_call_operand.vmem [shape: f32[2,4,16], index: 0, kind: input, shape index: {}]
  %s1 = inlined_call_operand.vmem [shape: f32[8,4], index: 1, kind: input, shape index: {}]
  %s2 = inlined_call_operand.vmem [shape: f32[8,1], index: 2, kind: input, shape index: {}]
  %s3 = inlined_call_operand.vmem [shape: bf16[16,256], index: 3, kind: input, shape index: {}]
  %s4 = inlined_call_operand.hbm [shape: f32[1,256], index: 4, kind: input, shape index: {}]
  %s5 = inlined_call_operand.vmem [shape: bf16[128,128], index: 5, kind: input, shape index: {}]
  %s6 = inlined_call_operand.vmem [shape: f32[1,128], index: 6, kind: input, shape index: {}]
  %s7 = inlined_call_operand.vmem [shape: bf16[128,128], index: 7, kind: input, shape index: {}]
  %s8 = inlined_call_operand.vmem [shape: f32[1,128], index: 8, kind: input, shape index: {}]
  %s9 = inlined_call_operand.vmem [shape: f32[16,16], index: 9, kind: output, shape index: {0}]
  %s10 = inlined_call_operand.vmem [shape: f32[16,128], index: 10, kind: output, shape index: {1}]
  %s11 = inlined_call_operand.vmem [shape: f32[16,128], index: 11, kind: output, shape index: {2}]
  %12 = xla_tuple %s9, %s10, %s11
  %s13 = sld [smem:[#allocation0]]
  $region66: #{_forward_impl.1} parent=0
    _
  %s15 = ssub.s32 1, %s13
  %s16 = scalar_select 0, %s15, %s13
  $region1: #{_forward_impl.1} parent=0
    #allocation2 [shape = 'u8[1024]{0}', space=vmem, size = 0x400, scoped, tag = 'input window, operand 4, single buffered']
    #allocation3 [shape = 's32[1]{0}', space=sflag, size = 0x4, scoped, tag = 'scoped memory for _forward_impl.1']
    %17 = vsyncpa [#allocation3], 0
    // Predicated region
    $region2: #{_forward_impl.1} parent=1 // pred_check
      _
    $region3: #{_forward_impl.1} parent=1 // pred_check_branch
      %19 = sbr.rel (0) target = $region5
    $region4: #{_forward_impl.1} parent=1 // pred_region
      _
    $region5: #{_forward_impl.1} parent=1 // pred_fallthru
      _
    // Predicated region
    $region6: #{_forward_impl.1} parent=1 // pred_check
      _
    $region7: #{_forward_impl.1} parent=1 // pred_check_branch
      %21 = sbr.rel (0) target = $region9
    $region8: #{_forward_impl.1} parent=1 // pred_region
      _
    $region9: #{_forward_impl.1} parent=1 // pred_fallthru
      _
    // Predicated region
    $region10: #{_forward_impl.1} parent=1 // pred_check
      _
    $region11: #{_forward_impl.1} parent=1 // pred_check_branch
      %23 = sbr.rel (0) target = $region13
    $region12: #{_forward_impl.1} parent=1 // pred_region
      _
    $region13: #{_forward_impl.1} parent=1 // pred_fallthru
      _
    // Predicated region
    $region14: #{_forward_impl.1} parent=1 // pred_check
      _
    $region15: #{_forward_impl.1} parent=1 // pred_check_branch
      %25 = sbr.rel (0) target = $region17
    $region16: #{_forward_impl.1} parent=1 // pred_region
      _
    $region17: #{_forward_impl.1} parent=1 // pred_fallthru
      _
    // Predicated region
    $region18: #{_forward_impl.1} parent=1 // pred_check
      _
    $region19: #{_forward_impl.1} parent=1 // pred_check_branch
      %27 = sbr.rel (0) target = $region21
    $region20: #{_forward_impl.1} parent=1 // pred_region
      %s29 = ssub.s32 32, 32
      %30 = vsyncadd [#allocation3], %s29
      %s32 = sshll.u32 [#allocation2], 4
      %s33 = int_to_ptr.vmem [resolvable:$true] %s32
      %35 = dma.hbm_to_vmem [thread:$0]  %s4, 32, %s33, [#allocation3]
    $region21: #{_forward_impl.1} parent=1 // pred_fallthru
      _
    // Predicated region
    $region22: #{_forward_impl.1} parent=1 // pred_check
      _
    $region23: #{_forward_impl.1} parent=1 // pred_check_branch
      %37 = sbr.rel (0) target = $region25
    $region24: #{_forward_impl.1} parent=1 // pred_region
      _
    $region25: #{_forward_impl.1} parent=1 // pred_fallthru
      _
    // Predicated region
    $region26: #{_forward_impl.1} parent=1 // pred_check
      _
    $region27: #{_forward_impl.1} parent=1 // pred_check_branch
      %39 = sbr.rel (0) target = $region29
    $region28: #{_forward_impl.1} parent=1 // pred_region
      _
    $region29: #{_forward_impl.1} parent=1 // pred_fallthru
      _
    // Predicated region
    $region30: #{_forward_impl.1} parent=1 // pred_check
      _
    $region31: #{_forward_impl.1} parent=1 // pred_check_branch
      %41 = sbr.rel (0) target = $region33
    $region32: #{_forward_impl.1} parent=1 // pred_region
      _
    $region33: #{_forward_impl.1} parent=1 // pred_fallthru
      _
    // Predicated region
    $region34: #{_forward_impl.1} parent=1 // pred_check
      _
    $region35: #{_forward_impl.1} parent=1 // pred_check_branch
      %43 = sbr.rel (0) target = $region37
    $region36: #{_forward_impl.1} parent=1 // pred_region
      _
    $region37: #{_forward_impl.1} parent=1 // pred_fallthru
      _
    // Predicated region
    $region38: #{_forward_impl.1} parent=1 // pred_check
      _
    $region39: #{_forward_impl.1} parent=1 // pred_check_branch
      %45 = sbr.rel (0) target = $region41
    $region40: #{_forward_impl.1} parent=1 // pred_region
      %46 = dma.done [#allocation3], 32
    $region41: #{_forward_impl.1} parent=1 // pred_fallthru
      _
    %v48 = vld [vmem:[%s0] sm:$0xf]
    %v49 = vld [vmem:[%s0 + $0x4] sm:$0xf]
    %v50 = vld [vmem:[%s1] sm:$0xff]
    %v51 = vlaneseq
    %v52 = vshrl.u32 %v51, 7
    %v53 = vsub.s32 0, %v52
    %v54 = vrot.slane %v48, %v53
    %v55 = vlaneseq
    %v56 = vshrl.u32 %v55, 7
    %v57 = vsub.s32 0, %v56
    %v58 = vrot.slane %v49, %v57
    %60 = vset.pattern.permute.xlu0 0
    %61 = vperm.xlu0 %60, %v50
    %v62 = vpop.permute.xlu0 %61
    %v64 = vmul.f32 %v54, %v62
    %v65 = vmul.f32 %v58, %v62
    %v66 = vadd.f32 %v64, 0.0
    %v67 = vadd.f32 %v65, 0.0
    %v68 = vlaneseq
    %v69 = vshrl.u32 %v68, 7
    %v70 = vsub.s32 1, %v69
    %v71 = vrot.slane %v48, %v70
    %v72 = vlaneseq
    %v73 = vshrl.u32 %v72, 7
    %v74 = vsub.s32 1, %v73
    %v75 = vrot.slane %v49, %v74
    %76 = vset.pattern.permute.xlu0 1
    %77 = vperm.xlu0 %76, %v50
    %v78 = vpop.permute.xlu0 %77
    %v80 = vmul.f32 %v71, %v78
    %v81 = vmul.f32 %v75, %v78
    %v82 = vadd.f32 %v66, %v80
    %v83 = vadd.f32 %v67, %v81
    %v84 = vlaneseq
    %v85 = vshrl.u32 %v84, 7
    %v86 = vsub.s32 2, %v85
    %v87 = vrot.slane %v48, %v86
    %v88 = vlaneseq
    %v89 = vshrl.u32 %v88, 7
    %v90 = vsub.s32 2, %v89
    %v91 = vrot.slane %v49, %v90
    %92 = vset.pattern.permute.xlu0 2
    %93 = vperm.xlu0 %92, %v50
    %v94 = vpop.permute.xlu0 %93
    %v96 = vmul.f32 %v87, %v94
    %v97 = vmul.f32 %v91, %v94
    %v98 = vadd.f32 %v82, %v96
    %v99 = vadd.f32 %v83, %v97
    %v100 = vlaneseq
    %v101 = vshrl.u32 %v100, 7
    %v102 = vsub.s32 3, %v101
    %v103 = vrot.slane %v48, %v102
    %v104 = vlaneseq
    %v105 = vshrl.u32 %v104, 7
    %v106 = vsub.s32 3, %v105
    %v107 = vrot.slane %v49, %v106
    %108 = vset.pattern.permute.xlu0 3
    %109 = vperm.xlu0 %108, %v50
    %v110 = vpop.permute.xlu0 %109
    %v112 = vmul.f32 %v103, %v110
    %v113 = vmul.f32 %v107, %v110
    %v114 = vadd.f32 %v98, %v112
    %v115 = vadd.f32 %v99, %v113
    %v116 = vld [vmem:[%s2] sm:$0xff]
    %118 = vset.pattern.permute.xlu0 0
    %119 = vperm.xlu0 %118, %v116
    %v120 = vpop.permute.xlu0 %119
    %v122 = vadd.f32 %v114, %v120
    %v123 = vadd.f32 %v115, %v120
    %vm124 = vcmask 130048
    %125 = vst.msk [vmem:[%s9] sm:$0xff] %vm124, %v122
    %126 = vst.msk [vmem:[%s9 + $0x8] sm:$0xff] %vm124, %v123
    %v127 = vpack.c.bf16 %v123, %v122
    %v128 = vld [vmem:[%s3] sm:$0xff]
    %v129 = vld [vmem:[%s3 + $0x8] sm:$0xff]
    %v130 = vld [vmem:[#allocation2] sm:$0x3]
    %v132 = vlaneseq
    %v133 = vshrl.u32 %v132, 7
    %v134 = vsub.s32 0, %v133
    %v135 = vrot.slane %v130, %v134
    %v136 = vlaneseq
    %v137 = vshrl.u32 %v136, 7
    %v138 = vsub.s32 1, %v137
    %v139 = vrot.slane %v130, %v138
    %v144 = vunpack.c.l.b16 %v128
    %v145 = vunpack.c.h.b16 %v128
    %v146 = vunpack.c.l.b16 %v129
    %v147 = vunpack.c.h.b16 %v129
    %v148 = vpack.c.b16 %v146, %v144
    %v149 = vpack.c.b16 %v147, %v145
    %v153 = vsel %vm124, %v127, 0
    %155 = vmatprep.subr.bf16.mxu0 %v149
    %156 = vmatpush1.bf16.msra.mxu0 %v148
    %157 = vmatprep.subr.bf16.mxu0 0
    %158 = vmatpush1.bf16.msra.mxu0 0
    %159 = vmatprep.subr.bf16.mxu0 0
    %160 = vmatpush1.bf16.msra.mxu0 0
    %161 = vmatprep.subr.bf16.mxu0 0
    %162 = vmatpush1.bf16.msra.mxu0 0
    %163 = vmatprep.subr.bf16.mxu0 0
    %164 = vmatpush1.bf16.msra.mxu0 0
    %165 = vmatprep.subr.bf16.mxu0 0
    %166 = vmatpush1.bf16.msra.mxu0 0
    %167 = vmatprep.subr.bf16.mxu0 0
    %168 = vmatpush1.bf16.msra.mxu0 0
    %169 = vmatprep.subr.bf16.mxu0 0
    %170 = vmatpush1.bf16.msra.mxu0 0
    %171 = vmatprep.subr.bf16.mxu0 0
    %172 = vmatpush1.bf16.msra.mxu0 0
    %173 = vmatprep.subr.bf16.mxu0 0
    %174 = vmatpush1.bf16.msra.mxu0 0
    %175 = vmatprep.subr.bf16.mxu0 0
    %176 = vmatpush1.bf16.msra.mxu0 0
    %177 = vmatprep.subr.bf16.mxu0 0
    %178 = vmatpush1.bf16.msra.mxu0 0
    %179 = vmatprep.subr.bf16.mxu0 0
    %180 = vmatpush1.bf16.msra.mxu0 0
    %181 = vmatprep.subr.bf16.mxu0 0
    %182 = vmatpush1.bf16.msra.mxu0 0
    %183 = vmatprep.subr.bf16.mxu0 0
    %184 = vmatpush1.bf16.msra.mxu0 0
    %185 = vmatprep.subr.bf16.mxu0 0
    %186 = vmatpush1.bf16.msra.mxu0 0
    %187 = vmatprep.mubr.bf16.mxu0 0
    %188 = vmatmul.mubr.bf16.gmra.mrb[0].mxu0 %v153
    %v189 = vpop.f32.mrb[0].mxu0
    %v190 = vadd.f32 %v135, %v189
    %v191 = vpop.f32.mrb[0].mxu0
    %v192 = vadd.f32 %v139, %v191
    %v193 = vpop.f32.mrb[0].mxu0
    %v194 = vadd.f32 %v135, %v193
    %v195 = vpop.f32.mrb[0].mxu0
    %v196 = vadd.f32 %v139, %v195
    %197 = vdwg.mxu0
    %v198 = vpack.c.bf16 %v194, %v190
    %v199 = vpack.c.bf16 %v196, %v192
    %v200 = vld [vmem:[%s5] sm:$0xf]
    %v201 = vld [vmem:[%s5 + $0x4] sm:$0xf]
    %v202 = vld [vmem:[%s5 + $0x8] sm:$0xf]
    %v203 = vld [vmem:[%s5 + $0xc] sm:$0xf]
    %v204 = vld [vmem:[%s5 + $0x10] sm:$0xf]
    %v205 = vld [vmem:[%s5 + $0x14] sm:$0xf]
    %v206 = vld [vmem:[%s5 + $0x18] sm:$0xf]
    %v207 = vld [vmem:[%s5 + $0x1c] sm:$0xf]
    %v208 = vld [vmem:[%s5 + $0x20] sm:$0xf]
    %v209 = vld [vmem:[%s5 + $0x24] sm:$0xf]
    %v210 = vld [vmem:[%s5 + $0x28] sm:$0xf]
    %v211 = vld [vmem:[%s5 + $0x2c] sm:$0xf]
    %v212 = vld [vmem:[%s5 + $0x30] sm:$0xf]
    %v213 = vld [vmem:[%s5 + $0x34] sm:$0xf]
    %v214 = vld [vmem:[%s5 + $0x38] sm:$0xf]
    %v215 = vld [vmem:[%s5 + $0x3c] sm:$0xf]
    %v216 = vld [vmem:[%s6] sm:$0x1]
    %v218 = vlaneseq
    %v219 = vshrl.u32 %v218, 7
    %v220 = vsub.s32 0, %v219
    %v221 = vrot.slane %v216, %v220
    %v239 = vunpack.c.l.b16 %v200
    %v240 = vunpack.c.l.b16 %v201
    %v241 = vunpack.c.l.b16 %v202
    %v242 = vunpack.c.l.b16 %v203
    %v243 = vunpack.c.l.b16 %v204
    %v244 = vunpack.c.l.b16 %v205
    %v245 = vunpack.c.l.b16 %v206
    %v246 = vunpack.c.l.b16 %v207
    %v247 = vunpack.c.l.b16 %v208
    %v248 = vunpack.c.l.b16 %v209
    %v249 = vunpack.c.l.b16 %v210
    %v250 = vunpack.c.l.b16 %v211
    %v251 = vunpack.c.l.b16 %v212
    %v252 = vunpack.c.l.b16 %v213
    %v253 = vunpack.c.l.b16 %v214
    %v254 = vunpack.c.l.b16 %v215
    %v255 = vpack.c.b16 %v240, %v239
    %v256 = vpack.c.b16 %v242, %v241
    %v257 = vpack.c.b16 %v244, %v243
    %v258 = vpack.c.b16 %v246, %v245
    %v259 = vpack.c.b16 %v248, %v247
    %v260 = vpack.c.b16 %v250, %v249
    %v261 = vpack.c.b16 %v252, %v251
    %v262 = vpack.c.b16 %v254, %v253
    %271 = vmatprep.subr.bf16.mxu0 0
    %272 = vmatpush1.bf16.msra.mxu0 %v255
    %273 = vmatprep.subr.bf16.mxu0 0
    %274 = vmatpush1.bf16.msra.mxu0 %v256
    %275 = vmatprep.subr.bf16.mxu0 0
    %276 = vmatpush1.bf16.msra.mxu0 %v257
    %277 = vmatprep.subr.bf16.mxu0 0
    %278 = vmatpush1.bf16.msra.mxu0 %v258
    %279 = vmatprep.subr.bf16.mxu0 0
    %280 = vmatpush1.bf16.msra.mxu0 %v259
    %281 = vmatprep.subr.bf16.mxu0 0
    %282 = vmatpush1.bf16.msra.mxu0 %v260
    %283 = vmatprep.subr.bf16.mxu0 0
    %284 = vmatpush1.bf16.msra.mxu0 %v261
    %285 = vmatprep.subr.bf16.mxu0 0
    %286 = vmatpush1.bf16.msra.mxu0 %v262
    %287 = vmatprep.subr.bf16.mxu0 0
    %288 = vmatpush1.bf16.msra.mxu0 0
    %289 = vmatprep.subr.bf16.mxu0 0
    %290 = vmatpush1.bf16.msra.mxu0 0
    %291 = vmatprep.subr.bf16.mxu0 0
    %292 = vmatpush1.bf16.msra.mxu0 0
    %293 = vmatprep.subr.bf16.mxu0 0
    %294 = vmatpush1.bf16.msra.mxu0 0
    %295 = vmatprep.subr.bf16.mxu0 0
    %296 = vmatpush1.bf16.msra.mxu0 0
    %297 = vmatprep.subr.bf16.mxu0 0
    %298 = vmatpush1.bf16.msra.mxu0 0
    %299 = vmatprep.subr.bf16.mxu0 0
    %300 = vmatpush1.bf16.msra.mxu0 0
    %301 = vmatprep.subr.bf16.mxu0 0
    %302 = vmatpush1.bf16.msra.mxu0 0
    %303 = vmatprep.mubr.bf16.mxu0 0
    %304 = vmatmul.mubr.bf16.gmra.mrb[0].mxu0 %v198
    %v305 = vpop.f32.mrb[0].mxu0
    %v306 = vadd.f32 %v221, %v305
    %v307 = vpop.f32.mrb[0].mxu0
    %v308 = vpop.f32.mrb[0].mxu0
    %v309 = vadd.f32 %v221, %v308
    %v310 = vpop.f32.mrb[0].mxu0
    %311 = vdwg.mxu0
    %312 = vst [vmem:[%s10] sm:$0xff] %v306
    %313 = vst [vmem:[%s10 + $0x8] sm:$0xff] %v309
    %v314 = vld [vmem:[%s7] sm:$0xf]
    %v315 = vld [vmem:[%s7 + $0x4] sm:$0xf]
    %v316 = vld [vmem:[%s7 + $0x8] sm:$0xf]
    %v317 = vld [vmem:[%s7 + $0xc] sm:$0xf]
    %v318 = vld [vmem:[%s7 + $0x10] sm:$0xf]
    %v319 = vld [vmem:[%s7 + $0x14] sm:$0xf]
    %v320 = vld [vmem:[%s7 + $0x18] sm:$0xf]
    %v321 = vld [vmem:[%s7 + $0x1c] sm:$0xf]
    %v322 = vld [vmem:[%s7 + $0x20] sm:$0xf]
    %v323 = vld [vmem:[%s7 + $0x24] sm:$0xf]
    %v324 = vld [vmem:[%s7 + $0x28] sm:$0xf]
    %v325 = vld [vmem:[%s7 + $0x2c] sm:$0xf]
    %v326 = vld [vmem:[%s7 + $0x30] sm:$0xf]
    %v327 = vld [vmem:[%s7 + $0x34] sm:$0xf]
    %v328 = vld [vmem:[%s7 + $0x38] sm:$0xf]
    %v329 = vld [vmem:[%s7 + $0x3c] sm:$0xf]
    %v330 = vld [vmem:[%s8] sm:$0x1]
    %v332 = vlaneseq
    %v333 = vshrl.u32 %v332, 7
    %v334 = vsub.s32 0, %v333
    %v335 = vrot.slane %v330, %v334
    %v353 = vunpack.c.l.b16 %v314
    %v354 = vunpack.c.l.b16 %v315
    %v355 = vunpack.c.l.b16 %v316
    %v356 = vunpack.c.l.b16 %v317
    %v357 = vunpack.c.l.b16 %v318
    %v358 = vunpack.c.l.b16 %v319
    %v359 = vunpack.c.l.b16 %v320
    %v360 = vunpack.c.l.b16 %v321
    %v361 = vunpack.c.l.b16 %v322
    %v362 = vunpack.c.l.b16 %v323
    %v363 = vunpack.c.l.b16 %v324
    %v364 = vunpack.c.l.b16 %v325
    %v365 = vunpack.c.l.b16 %v326
    %v366 = vunpack.c.l.b16 %v327
    %v367 = vunpack.c.l.b16 %v328
    %v368 = vunpack.c.l.b16 %v329
    %v369 = vpack.c.b16 %v354, %v353
    %v370 = vpack.c.b16 %v356, %v355
    %v371 = vpack.c.b16 %v358, %v357
    %v372 = vpack.c.b16 %v360, %v359
    %v373 = vpack.c.b16 %v362, %v361
    %v374 = vpack.c.b16 %v364, %v363
    %v375 = vpack.c.b16 %v366, %v365
    %v376 = vpack.c.b16 %v368, %v367
    %385 = vmatprep.subr.bf16.mxu0 0
    %386 = vmatpush1.bf16.msra.mxu0 %v369
    %387 = vmatprep.subr.bf16.mxu0 0
    %388 = vmatpush1.bf16.msra.mxu0 %v370
    %389 = vmatprep.subr.bf16.mxu0 0
    %390 = vmatpush1.bf16.msra.mxu0 %v371
    %391 = vmatprep.subr.bf16.mxu0 0
    %392 = vmatpush1.bf16.msra.mxu0 %v372
    %393 = vmatprep.subr.bf16.mxu0 0
    %394 = vmatpush1.bf16.msra.mxu0 %v373
    %395 = vmatprep.subr.bf16.mxu0 0
    %396 = vmatpush1.bf16.msra.mxu0 %v374
    %397 = vmatprep.subr.bf16.mxu0 0
    %398 = vmatpush1.bf16.msra.mxu0 %v375
    %399 = vmatprep.subr.bf16.mxu0 0
    %400 = vmatpush1.bf16.msra.mxu0 %v376
    %401 = vmatprep.subr.bf16.mxu0 0
    %402 = vmatpush1.bf16.msra.mxu0 0
    %403 = vmatprep.subr.bf16.mxu0 0
    %404 = vmatpush1.bf16.msra.mxu0 0
    %405 = vmatprep.subr.bf16.mxu0 0
    %406 = vmatpush1.bf16.msra.mxu0 0
    %407 = vmatprep.subr.bf16.mxu0 0
    %408 = vmatpush1.bf16.msra.mxu0 0
    %409 = vmatprep.subr.bf16.mxu0 0
    %410 = vmatpush1.bf16.msra.mxu0 0
    %411 = vmatprep.subr.bf16.mxu0 0
    %412 = vmatpush1.bf16.msra.mxu0 0
    %413 = vmatprep.subr.bf16.mxu0 0
    %414 = vmatpush1.bf16.msra.mxu0 0
    %415 = vmatprep.subr.bf16.mxu0 0
    %416 = vmatpush1.bf16.msra.mxu0 0
    %417 = vmatprep.mubr.bf16.mxu0 0
    %418 = vmatmul.mubr.bf16.gmra.mrb[0].mxu0 %v199
    %v419 = vpop.f32.mrb[0].mxu0
    %v420 = vadd.f32 %v335, %v419
    %v421 = vpop.f32.mrb[0].mxu0
    %v422 = vpop.f32.mrb[0].mxu0
    %v423 = vadd.f32 %v335, %v422
    %v424 = vpop.f32.mrb[0].mxu0
    %425 = vdwg.mxu0
    %426 = vst [vmem:[%s11] sm:$0xff] %v420
    %427 = vst [vmem:[%s11 + $0x8] sm:$0xff] %v423
    // Predicated region
    $region42: #{_forward_impl.1} parent=1 // pred_check
      _
    $region43: #{_forward_impl.1} parent=1 // pred_check_branch
      %429 = sbr.rel (0) target = $region45
    $region44: #{_forward_impl.1} parent=1 // pred_region
      _
    $region45: #{_forward_impl.1} parent=1 // pred_fallthru
      _
    // Predicated region
    $region46: #{_forward_impl.1} parent=1 // pred_check
      _
    $region47: #{_forward_impl.1} parent=1 // pred_check_branch
      %431 = sbr.rel (0) target = $region49
    $region48: #{_forward_impl.1} parent=1 // pred_region
      _
    $region49: #{_forward_impl.1} parent=1 // pred_fallthru
      _
    // Predicated region
    $region50: #{_forward_impl.1} parent=1 // pred_check
      _
    $region51: #{_forward_impl.1} parent=1 // pred_check_branch
      %433 = sbr.rel (0) target = $region53
    $region52: #{_forward_impl.1} parent=1 // pred_region
      _
    $region53: #{_forward_impl.1} parent=1 // pred_fallthru
      _
    // Predicated region
    $region54: #{_forward_impl.1} parent=1 // pred_check
      _
    $region55: #{_forward_impl.1} parent=1 // pred_check_branch
      %435 = sbr.rel (0) target = $region57
    $region56: #{_forward_impl.1} parent=1 // pred_region
      _
    $region57: #{_forward_impl.1} parent=1 // pred_fallthru
      _
    // Predicated region
    $region58: #{_forward_impl.1} parent=1 // pred_check
      _
    $region59: #{_forward_impl.1} parent=1 // pred_check_branch
      %437 = sbr.rel (0) target = $region61
    $region60: #{_forward_impl.1} parent=1 // pred_region
      _
    $region61: #{_forward_impl.1} parent=1 // pred_fallthru
      _
    // Predicated region
    $region62: #{_forward_impl.1} parent=1 // pred_check
      _
    $region63: #{_forward_impl.1} parent=1 // pred_check_branch
      %439 = sbr.rel (0) target = $region65
    $region64: #{_forward_impl.1} parent=1 // pred_region
      _
    $region65: #{_forward_impl.1} parent=1 // pred_fallthru
      _
    %440 = vsyncpa [#allocation3], 1

</llo_original>
